<compile_context>
chip_gen: v5e
topology: v5e:2x2
jax: 0.10.0
libtpu: 0.0.40
codegen_flags: <defaults>
</compile_context>

<pallas_src>
import functools

import jax
import jax.numpy as jnp
from jax.experimental import pallas as pl
from jax.experimental.pallas import tpu as pltpu


def _round_up(x, m):
    return ((x + m - 1) // m) * m


def _center_loss_kernel(x_ref, labels_ref, c_ref, out_ref, acc_ref, *,
                        b_tile, c_chunk, batch):
    # x_ref:      (b_tile, D)    feature tile (VMEM)
    # labels_ref: (b_tile, 1)    int32 labels for this tile (VMEM)
    # c_ref:      (c_chunk, D)   chunk of the centers table (VMEM)
    # out_ref:    (8, 128)       per-tile partial-sum block (VMEM)
    # acc_ref:    (b_tile, D)    f32 scratch accumulating each row's own center
    i = pl.program_id(0)          # batch-tile index   ("parallel")
    k = pl.program_id(1)          # class-chunk index  ("arbitrary" reduction)

    @pl.when(k == 0)
    def _():
        acc_ref[...] = jnp.zeros_like(acc_ref)

    # One-hot gather of each row's center from this class chunk via the MXU.
    labels = labels_ref[...]                                         # (b_tile, 1)
    class_ids = k * c_chunk + jax.lax.broadcasted_iota(
        jnp.int32, (b_tile, c_chunk), 1)
    onehot = (labels == class_ids).astype(jnp.float32)               # (b_tile, c_chunk)
    acc_ref[...] += jnp.dot(onehot, c_ref[...].astype(jnp.float32),
                            preferred_element_type=jnp.float32)

    @pl.when(k == pl.num_programs(1) - 1)
    def _():
        x = x_ref[...].astype(jnp.float32)                           # (b_tile, D)
        diff = x - acc_ref[...]
        d2 = jnp.sum(diff * diff, axis=1, keepdims=True)             # (b_tile, 1)
        d2 = jnp.clip(d2, 1e-12, 1e12)                               # torch clamp(1e-12, 1e12)
        rows = i * b_tile + jax.lax.broadcasted_iota(
            jnp.int32, (b_tile, 1), 0)
        d2 = jnp.where(rows < batch, d2, 0.0)                        # mask padded / ragged rows
        tile_sum = jnp.sum(d2, keepdims=True)                        # (1, 1)
        out_ref[...] = jnp.broadcast_to(tile_sum, out_ref.shape).astype(out_ref.dtype)


def center_loss(x, labels, centers, *, b_tile=512, c_chunk_max=2048):
    """x: (B, D) float, labels: (B,) int, centers: (C, D) float -> scalar f32."""
    B, D = x.shape
    C, D2 = centers.shape
    assert D == D2
    # NOTE: lane utilization of the feature axis is D/128; correct (just
    # lane-sparse) for very small D like the demo's feat_dim=2.
    # NOTE: out-of-range labels simply match no center (zero one-hot row); no
    # silent clipping to a wrong class.

    # Pad the batch to a sublane multiple (<= 7 extra rows; negligible HBM).
    B_pad = _round_up(B, 8)
    if B_pad != B:
        x = jnp.pad(x, ((0, B_pad - B), (0, 0)))
        labels = jnp.pad(labels, (0, B_pad - B))
    labels = labels.astype(jnp.int32).reshape(B_pad, 1)

    # Batch tile: multiple of 8, and keep >= 2 tiles when there is enough work
    # so the "parallel" axis can shard across v7x's two TensorCores.
    b_tile = min(b_tile, B_pad)
    if B_pad >= 16:
        b_tile = min(b_tile, _round_up((B_pad + 1) // 2, 8))
    b_tile = max(8, _round_up(b_tile, 8))
    n_tiles = pl.cdiv(B_pad, b_tile)

    # Class chunking (only matters for very large C*D center tables).
    if C <= c_chunk_max:
        c_chunk = C
        n_chunks = 1
        centers_p = centers
    else:
        c_chunk = c_chunk_max                      # multiple of 8
        C_pad = _round_up(C, c_chunk)
        centers_p = jnp.pad(centers, ((0, C_pad - C), (0, 0)))
        n_chunks = C_pad // c_chunk

    kernel = functools.partial(_center_loss_kernel, b_tile=b_tile,
                               c_chunk=c_chunk, batch=B)

    # VMEM budget: double-buffered inputs + output block + scratch, with
    # headroom, capped below v7x's 64 MiB physical VMEM.
    est = 4 * (2 * (b_tile * D + b_tile + c_chunk * D) + 2 * 8 * 128 + b_tile * D)
    vmem_limit = int(min(56 * 2**20, max(2 * est, 16 * 2**20)))

    partial_blocks = pl.pallas_call(
        kernel,
        out_shape=jax.ShapeDtypeStruct((n_tiles * 8, 128), jnp.float32),
        grid_spec=pltpu.PrefetchScalarGridSpec(
            num_scalar_prefetch=0,
            grid=(n_tiles, n_chunks),
            in_specs=[
                # x / labels tiles depend only on the batch-tile axis -> each
                # is DMA'd once per tile, not once per class chunk.
                pl.BlockSpec((b_tile, D), lambda i, k: (i, 0)),
                pl.BlockSpec((b_tile, 1), lambda i, k: (i, 0)),
                pl.BlockSpec((c_chunk, D), lambda i, k: (k, 0)),
            ],
            out_specs=pl.BlockSpec((8, 128), lambda i, k: (i, 0)),
            scratch_shapes=[pltpu.VMEM((b_tile, D), jnp.float32)],
        ),
        compiler_params=pltpu.CompilerParams(
            dimension_semantics=("parallel", "arbitrary"),
            vmem_limit_bytes=vmem_limit,
        ),
    )(x, labels, centers_p)

    # Every element of block i holds tile i's partial sum; pick one per tile.
    partials = partial_blocks.reshape(n_tiles, 8, 128)[:, 0, 0]
    return jnp.sum(partials) / B


if __name__ == "__main__":
    num_classes = 10
    feat_dim = 2
    batch_size = 8

    key = jax.random.PRNGKey(0)
    k_centers, k_x, k_labels = jax.random.split(key, 3)

    # Deterministic "parameter" init (torch.randn equivalent shape).
    centers = jax.random.normal(k_centers, (num_classes, feat_dim), jnp.float32)
    x = jax.random.normal(k_x, (batch_size, feat_dim), jnp.float32)
    labels = jax.random.randint(k_labels, (batch_size,), 0, num_classes, jnp.int32)

    loss = center_loss(x, labels, centers)
    jax.block_until_ready(loss)

    # Pure-JAX reference: same semantics as the torch module (per-sample
    # squared distance to its own class center, clamped, then mean).
    ref = jnp.mean(jnp.clip(jnp.sum((x - centers[labels]) ** 2, axis=1),
                            1e-12, 1e12))
    assert jnp.allclose(loss, ref, rtol=1e-4, atol=1e-5), (loss, ref)

    print("KERNEL_OK")
</pallas_src>

<mosaic_0001>
module attributes {stable_mosaic.version = 11 : i64} {
  func.func @_center_loss_kernel(%arg0: i32, %arg1: i32, %arg2: memref<8x2xf32, #tpu.memory_space<vmem>>, %arg3: memref<8x1xi32, #tpu.memory_space<vmem>>, %arg4: memref<10x2xf32, #tpu.memory_space<vmem>>, %arg5: memref<8x128xf32, #tpu.memory_space<vmem>>, %arg6: memref<8x2xf32, #tpu.memory_space<vmem>>) attributes {dimension_semantics = [#tpu.dimension_semantics<parallel>, #tpu.dimension_semantics<arbitrary>], iteration_bounds = array<i64: 1, 1>, scalar_prefetch = 0 : i64, scratch_operands = 1 : i64, tpu.core_type = #tpu.core_type<tc>, window_params = [{transform_indices = @transform_0, window_bounds = array<i64: 8, 2>}, {transform_indices = @transform_1, window_bounds = array<i64: 8, 1>}, {transform_indices = @transform_2, window_bounds = array<i64: 10, 2>}, {transform_indices = @transform_3, window_bounds = array<i64: 8, 128>}]} {
    %c0_i32 = arith.constant 0 : i32
    %0 = arith.cmpi eq, %arg1, %c0_i32 : i32
    %1 = arith.extui %0 : i1 to i32
    %c0_i32_0 = arith.constant 0 : i32
    %2 = arith.cmpi ne, %1, %c0_i32_0 : i32
    scf.if %2 {
      %cst_10 = arith.constant 0.000000e+00 : f32
      %20 = vector.broadcast %cst_10 : f32 to vector<8x2xf32>
      %c0_11 = arith.constant 0 : index
      %c0_12 = arith.constant 0 : index
      %21 = vector.load %arg6[%c0_11, %c0_12] : memref<8x2xf32, #tpu.memory_space<vmem>>, vector<8x2xf32>
      tpu.vector_store %arg6[%c0_11, %c0_12], %20 {strides = array<i32>} : memref<8x2xf32, #tpu.memory_space<vmem>>, vector<8x2xf32>,
    } else {
    }
    %c0 = arith.constant 0 : index
    %c0_1 = arith.constant 0 : index
    %3 = vector.load %arg3[%c0, %c0_1] : memref<8x1xi32, #tpu.memory_space<vmem>>, vector<8x1xi32>
    %c10_i32 = arith.constant 10 : i32
    %4 = arith.muli %arg1, %c10_i32 : i32
    %5 = tpu.iota {dimensions = array<i32: 1>} : vector<8x10xi32>
    %6 = vector.broadcast %4 : i32 to vector<8x10xi32>
    %7 = arith.addi %6, %5 : vector<8x10xi32>
    %8 = vector.broadcast %3 : vector<8x1xi32> to vector<8x10xi32>
    %9 = arith.cmpi eq, %8, %7 : vector<8x10xi32>
    %10 = arith.extui %9 : vector<8x10xi1> to vector<8x10xi32>
    %11 = arith.sitofp %10 : vector<8x10xi32> to vector<8x10xf32>
    %c0_2 = arith.constant 0 : index
    %c0_3 = arith.constant 0 : index
    %12 = vector.load %arg6[%c0_2, %c0_3] : memref<8x2xf32, #tpu.memory_space<vmem>>, vector<8x2xf32>
    %c0_4 = arith.constant 0 : index
    %c0_5 = arith.constant 0 : index
    %13 = vector.load %arg4[%c0_4, %c0_5] : memref<10x2xf32, #tpu.memory_space<vmem>>, vector<10x2xf32>
    %cst = arith.constant dense<0.000000e+00> : vector<8x2xf32>
    %14 = tpu.matmul %11, %13, %cst {dimension_numbers = #tpu.dot_dimension_numbers<[1], [0], [0], [1], [0, 0, 1, 1], [], []>} : vector<8x10xf32>, vector<10x2xf32>, vector<8x2xf32> -> vector<8x2xf32>
    %15 = arith.addf %12, %14 : vector<8x2xf32>
    %c0_6 = arith.constant 0 : index
    %c0_7 = arith.constant 0 : index
    %16 = vector.load %arg6[%c0_6, %c0_7] : memref<8x2xf32, #tpu.memory_space<vmem>>, vector<8x2xf32>
    tpu.vector_store %arg6[%c0_6, %c0_7], %15 {strides = array<i32>} : memref<8x2xf32, #tpu.memory_space<vmem>>, vector<8x2xf32>,
    %c0_i32_8 = arith.constant 0 : i32
    %17 = arith.cmpi eq, %arg1, %c0_i32_8 : i32
    %18 = arith.extui %17 : i1 to i32
    %c0_i32_9 = arith.constant 0 : i32
    %19 = arith.cmpi ne, %18, %c0_i32_9 : i32
    scf.if %19 {
      %c0_10 = arith.constant 0 : index
      %c0_11 = arith.constant 0 : index
      %20 = vector.load %arg2[%c0_10, %c0_11] : memref<8x2xf32, #tpu.memory_space<vmem>>, vector<8x2xf32>
      %c0_12 = arith.constant 0 : index
      %c0_13 = arith.constant 0 : index
      %21 = vector.load %arg6[%c0_12, %c0_13] : memref<8x2xf32, #tpu.memory_space<vmem>>, vector<8x2xf32>
      %22 = arith.subf %20, %21 : vector<8x2xf32>
      %23 = arith.mulf %22, %22 : vector<8x2xf32>
      %cst_14 = arith.constant dense<0.000000e+00> : vector<8xf32>
      %24 = vector.multi_reduction <add>, %23, %cst_14 [1] : vector<8x2xf32> to vector<8xf32>
      %25 = vector.shape_cast %24 : vector<8xf32> to vector<8x1xf32>
      %cst_15 = arith.constant 9.99999996E-13 : f32
      %cst_16 = arith.constant 9.99999995E+11 : f32
      %26 = vector.broadcast %cst_15 : f32 to vector<8x1xf32>
      %27 = arith.maximumf %26, %25 : vector<8x1xf32>
      %28 = vector.broadcast %cst_16 : f32 to vector<8x1xf32>
      %29 = arith.minimumf %28, %27 : vector<8x1xf32>
      %c8_i32 = arith.constant 8 : i32
      %30 = arith.muli %arg0, %c8_i32 : i32
      %31 = tpu.iota {dimensions = array<i32: 0>} : vector<8x1xi32>
      %32 = vector.broadcast %30 : i32 to vector<8x1xi32>
      %33 = arith.addi %32, %31 : vector<8x1xi32>
      %c8_i32_17 = arith.constant 8 : i32
      %34 = vector.broadcast %c8_i32_17 : i32 to vector<8x1xi32>
      %35 = arith.cmpi slt, %33, %34 : vector<8x1xi32>
      %cst_18 = arith.constant 0.000000e+00 : f32
      %36 = vector.broadcast %cst_18 : f32 to vector<8x1xf32>
      %37 = arith.select %35, %29, %36 : vector<8x1xi1>, vector<8x1xf32>
      %38 = vector.shape_cast %37 : vector<8x1xf32> to vector<1x8x1xf32>
      %cst_19 = arith.constant dense<0.000000e+00> : vector<1xf32>
      %39 = vector.multi_reduction <add>, %38, %cst_19 [1, 2] : vector<1x8x1xf32> to vector<1xf32>
      %40 = vector.shape_cast %39 : vector<1xf32> to vector<1x1x1xf32>
      %41 = vector.extract %40[0, 0, 0] : f32 from vector<1x1x1xf32>
      %42 = vector.broadcast %41 : f32 to vector<1x1xf32>
      %43 = vector.shape_cast %42 : vector<1x1xf32> to vector<1x1xf32>
      %44 = vector.broadcast %43 : vector<1x1xf32> to vector<8x128xf32>
      %c0_20 = arith.constant 0 : index
      %c0_21 = arith.constant 0 : index
      %45 = vector.load %arg5[%c0_20, %c0_21] : memref<8x128xf32, #tpu.memory_space<vmem>>, vector<8x128xf32>
      tpu.vector_store %arg5[%c0_20, %c0_21], %44 {strides = array<i32>} : memref<8x128xf32, #tpu.memory_space<vmem>>, vector<8x128xf32>,
    } else {
    }
    return
  }
  func.func @transform_0(%arg0: i32, %arg1: i32) -> (i32, i32) {
    %c0_i32 = arith.constant 0 : i32
    %c0_i32_0 = arith.constant 0 : i32
    return %arg0, %c0_i32 : i32, i32
  }
  func.func @transform_1(%arg0: i32, %arg1: i32) -> (i32, i32) {
    %c0_i32 = arith.constant 0 : i32
    %c0_i32_0 = arith.constant 0 : i32
    return %arg0, %c0_i32 : i32, i32
  }
  func.func @transform_2(%arg0: i32, %arg1: i32) -> (i32, i32) {
    %c0_i32 = arith.constant 0 : i32
    %c0_i32_0 = arith.constant 0 : i32
    return %arg1, %c0_i32 : i32, i32
  }
  func.func @transform_3(%arg0: i32, %arg1: i32) -> (i32, i32) {
    %c0_i32 = arith.constant 0 : i32
    %c0_i32_0 = arith.constant 0 : i32
    return %arg0, %c0_i32 : i32, i32
  }
}

</mosaic_0001>

<llo_original>
// kernel: tpu_custom_call.1
$region0: #{tpu_custom_call.1}
  #allocation0 [shape = 'u32[]', space=smem, size = 0x4, offset = 0x4, fixed_abs, tag = 'smem constant byte address 0x4 - core index']
  #allocation1 [shape = 'u32[72,128]{1,0:T(1,128)}', space=vmem, size = 0x9000, scoped, tag = 'internal scratch']
  #allocation2 [shape = 'f32[8,2]{1,0:T(8,128)}', space=vmem, size = 0x1000, scoped, tag = 'scratch operand']
  %s0 = inlined_call_operand.vmem [shape: f32[8,2], index: 0, kind: input, shape index: {}]
  %s1 = inlined_call_operand.vmem [shape: s32[8,1], index: 1, kind: input, shape index: {}]
  %s2 = inlined_call_operand.vmem [shape: f32[10,2], index: 2, kind: input, shape index: {}]
  %s3 = inlined_call_operand.hbm [shape: f32[8,128], index: 3, kind: output, shape index: {}]
  %s4 = sld [smem:[#allocation0]]
  $region30: #{tpu_custom_call.1} parent=0
    _
  %s6 = ssub.s32 1, %s4
  %s7 = scalar_select 0, %s6, %s4
  $region1: #{tpu_custom_call.1} parent=0
    #allocation3 [shape = 'u8[4096]{0}', space=vmem, size = 0x1000, scoped, tag = 'output window, operand 0, single buffered']
    #allocation4 [shape = 's32[1]{0}', space=sflag, size = 0x4, scoped, tag = 'scoped memory for tpu_custom_call.1']
    %8 = vsyncpa [#allocation4], 0
    // Predicated region
    $region2: #{tpu_custom_call.1} parent=1 // pred_check
      _
    $region3: #{tpu_custom_call.1} parent=1 // pred_check_branch
      %10 = sbr.rel (0) target = $region5
    $region4: #{tpu_custom_call.1} parent=1 // pred_region
      _
    $region5: #{tpu_custom_call.1} parent=1 // pred_fallthru
      _
    // Predicated region
    $region6: #{tpu_custom_call.1} parent=1 // pred_check
      _
    $region7: #{tpu_custom_call.1} parent=1 // pred_check_branch
      %12 = sbr.rel (0) target = $region9
    $region8: #{tpu_custom_call.1} parent=1 // pred_region
      _
    $region9: #{tpu_custom_call.1} parent=1 // pred_fallthru
      _
    // Predicated region
    $region10: #{tpu_custom_call.1} parent=1 // pred_check
      _
    $region11: #{tpu_custom_call.1} parent=1 // pred_check_branch
      %14 = sbr.rel (0) target = $region13
    $region12: #{tpu_custom_call.1} parent=1 // pred_region
      _
    $region13: #{tpu_custom_call.1} parent=1 // pred_fallthru
      _
    %p15 = scmp.eq.s32.totalorder 0, 0
    // Predicated region
    $region14: #{tpu_custom_call.1} parent=1 // pred_check
      %p16 = pneg %p15
    $region15: #{tpu_custom_call.1} parent=1 // pred_check_branch
      %18 = sbr.rel (%p16) target = $region17
    $region16: #{tpu_custom_call.1} parent=1 // pred_region
      %vm19 = vcmask 15360
      %20 = vst.msk [vmem:[#allocation2] sm:$0xff] %vm19, 0.0
    $region17: #{tpu_custom_call.1} parent=1 // pred_fallthru
      _
    %v21 = vld [vmem:[%s1] sm:$0xff]
    %s22 = smul.u32 0, 10
    %v23 = vlaneseq
    %v24 = vand.u32 %v23, 127
    %v25 = vstv %s22
    %v26 = vadd.s32 %v25, %v24
    %27 = vset.pattern.permute.xlu0 0
    %28 = vperm.xlu0 %27, %v21
    %v29 = vpop.permute.xlu0 %28
    %vm30 = vcmp.eq.s32.totalorder %v29, %v26
    %v31 = vsel %vm30, 1, 0
    %v32 = vcvt.s32.f32 %v31
    %v33 = vld [vmem:[#allocation2] sm:$0xff]
    %v34 = vld [vmem:[%s2] sm:$0xff]
    %v35 = vld [vmem:[%s2 + $0x8] sm:$0x3]
    %vm36 = vcmask 80896
    %v38 = vsel %vm36, %v32, 0
    %vm40 = vcmask 1041408
    %v42 = vsel %vm40, %v35, 0
    %44 = vmatpush.msra.mxu0 0.0
    %45 = vmatpush.msra.mxu0 0.0
    %46 = vmatpush.msra.mxu0 0.0
    %47 = vmatpush.msra.mxu0 0.0
    %48 = vmatpush.msra.mxu0 0.0
    %49 = vmatpush.msra.mxu0 0.0
    %50 = vmatpush.msra.mxu0 0.0
    %51 = vmatpush.msra.mxu0 0.0
    %52 = vmatpush.msra.mxu0 0.0
    %53 = vmatpush.msra.mxu0 0.0
    %54 = vmatpush.msra.mxu0 0.0
    %55 = vmatpush.msra.mxu0 0.0
    %56 = vmatpush.msra.mxu0 0.0
    %57 = vmatpush.msra.mxu0 0.0
    %58 = vmatpush.msra.mxu0 %v42
    %59 = vmatpush.msra.mxu0 %v34
    %60 = vmatmul.f32.gmra.mxu0 %v38
    %v61 = vpop.f32.mrf.mxu0
    %v62 = vadd.f32 0.0, %v61
    %63 = vdwg.mxu0
    %v64 = vadd.f32 %v33, %v62
    %vm65 = vcmask 15360
    %66 = vst.msk [vmem:[#allocation2] sm:$0xff] %vm65, %v64
    // Predicated region
    $region18: #{tpu_custom_call.1} parent=1 // pred_check
      %p67 = pneg %p15
    $region19: #{tpu_custom_call.1} parent=1 // pred_check_branch
      %69 = sbr.rel (%p67) target = $region21
    $region20: #{tpu_custom_call.1} parent=1 // pred_region
      %v70 = vld [vmem:[%s0] sm:$0xff]
      %v71 = vld [vmem:[#allocation2] sm:$0xff]
      %v72 = vsub.f32 %v70, %v71
      %v73 = vmul.f32 %v72, %v72
      %v74 = vsel %vm65, %v73, 0.0
      %75 = vadd.xlane.f32.xlu0 %v74
      %v76 = vpop.xlane.xlu0 %75
      %v77 = vmax.f32 %v76, 1e-12
      %v78 = vmin.f32 %v77, 1e+12
      %s79 = smul.u32 0, 8
      %v80 = vlaneseq
      %v81 = vshrl.u32 %v80, 7
      %v82 = vstv %s79
      %v83 = vadd.s32 %v82, %v81
      %vm84 = vcmp.lt.s32.totalorder %v83, 8
      %v85 = vsel %vm84, %v78, 0.0
      %vm86 = vcmask 7168
      %v87 = vsel %vm86, %v85, 0.0
      %88 = vadd.xlane.f32.xlu0 %v87
      %v89 = vpop.xlane.xlu0 %88
      %v90 = vrot.slane %v89, 4
      %v91 = vadd.f32 %v89, %v90
      %v92 = vrot.slane %v91, 2
      %v93 = vadd.f32 %v91, %v92
      %v94 = vrot.slane %v93, 1
      %v95 = vadd.f32 %v93, %v94
      %s96 = vtos %v95
      %v97 = vstv %s96
      %98 = vst [vmem:[#allocation3] sm:$0xff] %v97
    $region21: #{tpu_custom_call.1} parent=1 // pred_fallthru
      _
    // Predicated region
    $region22: #{tpu_custom_call.1} parent=1 // pred_check
      _
    $region23: #{tpu_custom_call.1} parent=1 // pred_check_branch
      %100 = sbr.rel (0) target = $region25
    $region24: #{tpu_custom_call.1} parent=1 // pred_region
      %102 = vsyncadd [#allocation4], 0
      %s104 = sshll.u32 [#allocation3], 4
      %s105 = int_to_ptr.vmem [resolvable:$true] %s104
      %s106 = sshll.u32 %s3, 4
      %s107 = int_to_ptr.hbm [resolvable:$true] %s106
      %109 = dma.vmem_to_hbm [thread:$0]  %s105, 128, %s107, [#allocation4]
    $region25: #{tpu_custom_call.1} parent=1 // pred_fallthru
      _
    // Predicated region
    $region26: #{tpu_custom_call.1} parent=1 // pred_check
      _
    $region27: #{tpu_custom_call.1} parent=1 // pred_check_branch
      %111 = sbr.rel (0) target = $region29
    $region28: #{tpu_custom_call.1} parent=1 // pred_region
      %113 = dma.done [#allocation4], 128
    $region29: #{tpu_custom_call.1} parent=1 // pred_fallthru
      _
    %114 = vsyncpa [#allocation4], 1

</llo_original>
